<compile_context>
chip_gen: v6e
topology: v6e:2x2x1
jax: 0.10.0
libtpu: 0.0.40
codegen_flags: <defaults>
</compile_context>

<pallas_src>
import jax
import jax.numpy as jnp
from jax.experimental import pallas as pl
from jax.experimental.pallas import tpu as pltpu


# --------------------------------------------------------------------------------------
# Generation-aware budgets
# --------------------------------------------------------------------------------------

def _device_kind():
    try:
        return jax.devices()[0].device_kind.lower()
    except Exception:
        return ""


def _vmem_budgets(kind):
    """Returns (scoped vmem limit, fused-path byte cap, per-grid-step tile byte cap)."""
    try:
        cap = int(pltpu.get_tpu_info().vmem_capacity_bytes)
    except Exception:
        cap = 64 * 1024 * 1024                      # conservative fallback
    if ("v7" in kind) or ("tpu7" in kind):
        cap = min(cap, 64 * 1024 * 1024)            # v7x: 64 MiB per TensorCore
    vmem_limit = min((cap * 3) // 4, 112 * 1024 * 1024)   # ~48 MiB v7x, ~96 MiB v5e/v6e
    fused_budget = (vmem_limit * 17) // 20          # keep shapes fused as long as possible
    tile_budget = (vmem_limit * 3) // 5             # per-grid-step I/O bytes, tiled path
    return vmem_limit, fused_budget, tile_budget


def _pick_hw_tile(hw, c, itemsize, tile_budget, blend_f32):
    # Per grid step: 2 buffers x 3 arrays (x, y, out) x itemsize, plus live in-kernel temps.
    temp_bytes = 8 if blend_f32 else 2 * itemsize
    per_elem = 6 * itemsize + temp_bytes
    max_t = tile_budget // (c * per_elem)
    t = max((max_t // 128) * 128, 128)
    return hw if t >= hw else t


# --------------------------------------------------------------------------------------
# Kernels
# --------------------------------------------------------------------------------------

def _attention_from_sum(s_col, inv_hw, wfc, bnsc, bnsh, wfcs, bfcs, c):
    """SK attention vectors from the per-channel spatial sum (fused-path, in-kernel).

    s_col: (C,1) f32 spatial sum of (x+y);  wfc: (d,C);  bnsc/bnsh: (d,1) folded BN;
    wfcs: (2C,d) fused d->2C projection;    bfcs: (2C,1).
    Returns (att0, att1), each (C,1) f32 (softmax over the M=2 branch axis).
    """
    mean = s_col * inv_hw                                               # (C, 1)
    z = jnp.dot(wfc, mean, preferred_element_type=jnp.float32)          # (d, 1)
    z = jnp.maximum(z * bnsc + bnsh, 0.0)                               # BN + ReLU
    a = jnp.dot(wfcs, z, preferred_element_type=jnp.float32) + bfcs     # (2C, 1)
    a0 = a[:c]
    a1 = a[c:]
    m = jnp.maximum(a0, a1)
    e0 = jnp.exp(a0 - m)
    e1 = jnp.exp(a1 - m)
    inv = 1.0 / (e0 + e1)        # exact reciprocal: tiny (C,1) vector, once per batch
    return e0 * inv, e1 * inv


def _make_fused_kernel(hw, c, blend_f32):
    """Single-pass kernel: whole (C, HW) slab per batch resident in VMEM."""
    inv_hw = 1.0 / float(hw)

    def kernel(x_ref, y_ref, wfc_ref, bnsc_ref, bnsh_ref, wfcs_ref, bfcs_ref, out_ref):
        # Sum each branch separately: no (C, HW) "x + y" f32 temporary is materialized.
        s = (jnp.sum(x_ref[0].astype(jnp.float32), axis=1, keepdims=True)
             + jnp.sum(y_ref[0].astype(jnp.float32), axis=1, keepdims=True))   # (C, 1)
        att0, att1 = _attention_from_sum(
            s, inv_hw, wfc_ref[...], bnsc_ref[...], bnsh_ref[...],
            wfcs_ref[...], bfcs_ref[...], c)
        if blend_f32:
            out_ref[0] = (x_ref[0].astype(jnp.float32) * att0
                          + y_ref[0].astype(jnp.float32) * att1).astype(out_ref.dtype)
        else:
            dt = out_ref.dtype
            out_ref[0] = x_ref[0] * att0.astype(dt) + y_ref[0] * att1.astype(dt)

    return kernel


def _make_reduce_kernel(hw, t, ragged):
    """Tiled pass 1: accumulate the per-(batch, channel) spatial sum of x + y."""

    def kernel(x_ref, y_ref, sum_ref):
        j = pl.program_id(1)

        @pl.when(j == 0)
        def _init():
            sum_ref[...] = jnp.zeros_like(sum_ref)

        xf = x_ref[0].astype(jnp.float32)                                # (C, T)
        yf = y_ref[0].astype(jnp.float32)

        if not ragged:
            # No padding anywhere: plain lane reduces, no mask ops at all.
            sum_ref[0] = (sum_ref[0]
                          + jnp.sum(xf, axis=1, keepdims=True)
                          + jnp.sum(yf, axis=1, keepdims=True))
        else:
            last = pl.num_programs(1) - 1

            @pl.when(j != last)
            def _full_tile():
                sum_ref[0] = (sum_ref[0]
                              + jnp.sum(xf, axis=1, keepdims=True)
                              + jnp.sum(yf, axis=1, keepdims=True))

            @pl.when(j == last)
            def _edge_tile():
                lane = jax.lax.broadcasted_iota(jnp.int32, xf.shape, 1)
                valid = (j * t + lane) < hw
                u = jnp.where(valid, xf + yf, 0.0)
                sum_ref[0] = sum_ref[0] + jnp.sum(u, axis=1, keepdims=True)

    return kernel


def _make_apply_kernel(c, blend_f32):
    """Tiled pass 2: pure elementwise blend; attention is precomputed per batch."""

    def kernel(att_ref, x_ref, y_ref, out_ref):
        att = att_ref[0]                  # (2C, 1) f32
        att0 = att[:c]
        att1 = att[c:]
        if blend_f32:
            out_ref[0] = (x_ref[0].astype(jnp.float32) * att0
                          + y_ref[0].astype(jnp.float32) * att1).astype(out_ref.dtype)
        else:
            dt = out_ref.dtype
            out_ref[0] = x_ref[0] * att0.astype(dt) + y_ref[0] * att1.astype(dt)

    return kernel


def _host_attention(sums, inv_hw, w_fc, bn_scale, bn_shift, wfcs2, bfcs2, c):
    """Per-batch attention from the (B, C, 1) spatial sums — trivial XLA op between passes."""
    hi = jax.lax.Precision.HIGHEST
    mean = sums[:, :, 0] * inv_hw                                        # (B, C)
    z = jnp.maximum(jnp.dot(mean, w_fc.T, precision=hi) * bn_scale + bn_shift, 0.0)
    a = jnp.dot(z, wfcs2.T, precision=hi) + bfcs2[:, 0][None, :]         # (B, 2C)
    a0, a1 = a[:, :c], a[:, c:]
    m = jnp.maximum(a0, a1)
    e0 = jnp.exp(a0 - m)
    e1 = jnp.exp(a1 - m)
    inv = 1.0 / (e0 + e1)
    att = jnp.concatenate([e0 * inv, e1 * inv], axis=1)                  # (B, 2C)
    return att.reshape(sums.shape[0], 2 * c, 1).astype(jnp.float32)


# --------------------------------------------------------------------------------------
# Wrapper
# --------------------------------------------------------------------------------------

def skconv_forward(x, y, w_fc, bn_scale, bn_shift, w_fcs, b_fcs,
                   *, force_tiled=False, hw_tile=None):
    """SKConv forward.

    x, y     : (B, C, H, W) f32 or bf16 (output matches this dtype)
    w_fc     : (d, C)      fc Conv2d(C, d, 1, bias=False).weight squeezed
    bn_scale : (d,)        eval-mode BN folded: gamma / sqrt(var + eps)
    bn_shift : (d,)        beta - running_mean * bn_scale
    w_fcs    : (M=2, C, d) fcs[i] Conv2d(d, C, 1).weight squeezed
    b_fcs    : (M=2, C)
    """
    B, C, H, W = x.shape
    assert y.shape == x.shape
    M, C2, d = w_fcs.shape
    assert M == 2 and C2 == C and w_fc.shape == (d, C)
    HW = H * W
    io_dtype = x.dtype
    itemsize = x.dtype.itemsize

    kind = _device_kind()
    is_v5 = "v5" in kind
    is_v7 = ("v7" in kind) or ("tpu7" in kind)
    vmem_limit, fused_budget, tile_budget = _vmem_budgets(kind)

    # Blend in bf16 where the VALU supports it (v6e/v7x); keep f32 math on v5e.
    blend_f32 = (io_dtype != jnp.bfloat16) or is_v5
    temp_bytes = 8 if blend_f32 else 2 * itemsize

    # Free reshapes only (no transposes): channels -> sublanes, spatial -> lanes.
    xr = x.reshape(B, C, HW)
    yr = y.reshape(B, C, HW)

    wfc = w_fc.astype(jnp.float32)
    bnsc_col = bn_scale.astype(jnp.float32).reshape(d, 1)
    bnsh_col = bn_shift.astype(jnp.float32).reshape(d, 1)
    wfcs2 = w_fcs.astype(jnp.float32).reshape(M * C, d)    # fused d -> 2C projection
    bfcs2 = b_fcs.astype(jnp.float32).reshape(M * C, 1)

    # Fused path moves 3x B*C*HW*itemsize of HBM; two-pass moves 5x. Stay fused while the
    # double-buffered blocks + live temps (+ small weight/headroom slack) fit VMEM.
    fused_est = C * HW * (6 * itemsize + temp_bytes) + (2 << 20)

    t = hw_tile if hw_tile is not None else _pick_hw_tile(HW, C, itemsize,
                                                          tile_budget, blend_f32)
    assert (t % 128 == 0) or (t == HW)
    nt = (HW + t - 1) // t

    use_fused = (not force_tiled) and (fused_est <= fused_budget)
    # v7x megacore: at B == 1 the fused grid=(B,) leaves one TensorCore idle; prefer the
    # two-pass path (apply pass is parallel over both B and HW tiles) when it can split.
    if use_fused and is_v7 and B == 1 and nt >= 2:
        use_fused = False

    if use_fused:
        out = pl.pallas_call(
            _make_fused_kernel(HW, C, blend_f32),
            out_shape=jax.ShapeDtypeStruct((B, C, HW), io_dtype),
            grid_spec=pltpu.PrefetchScalarGridSpec(
                num_scalar_prefetch=0,
                grid=(B,),
                in_specs=[
                    pl.BlockSpec((1, C, HW), lambda b: (b, 0, 0)),   # x
                    pl.BlockSpec((1, C, HW), lambda b: (b, 0, 0)),   # y
                    pl.BlockSpec((d, C), lambda b: (0, 0)),          # w_fc
                    pl.BlockSpec((d, 1), lambda b: (0, 0)),          # bn scale
                    pl.BlockSpec((d, 1), lambda b: (0, 0)),          # bn shift
                    pl.BlockSpec((M * C, d), lambda b: (0, 0)),      # w_fcs (fused)
                    pl.BlockSpec((M * C, 1), lambda b: (0, 0)),      # b_fcs (fused)
                ],
                out_specs=pl.BlockSpec((1, C, HW), lambda b: (b, 0, 0)),
            ),
            compiler_params=pltpu.CompilerParams(
                dimension_semantics=("parallel",),
                vmem_limit_bytes=vmem_limit),
        )(xr, yr, wfc, bnsc_col, bnsh_col, wfcs2, bfcs2)
        return out.reshape(B, C, H, W)

    # ---------------- HW-tiled two-pass path (feature maps too large for VMEM) ----------
    ragged = (HW % t) != 0

    # Pass 1: per-(batch, channel) spatial sum of x + y, accumulated across HW tiles.
    # (Reduction axis last / "arbitrary".)
    # Note: a (B, C, 2)-halves parallel reduce would also feed both v7x cores at B=1,
    # but the apply pass below (3/5 of the traffic) already parallelizes fully.
    sums = pl.pallas_call(
        _make_reduce_kernel(HW, t, ragged),
        out_shape=jax.ShapeDtypeStruct((B, C, 1), jnp.float32),
        grid_spec=pltpu.PrefetchScalarGridSpec(
            num_scalar_prefetch=0,
            grid=(B, nt),
            in_specs=[
                pl.BlockSpec((1, C, t), lambda b, j: (b, 0, j)),
                pl.BlockSpec((1, C, t), lambda b, j: (b, 0, j)),
            ],
            out_specs=pl.BlockSpec((1, C, 1), lambda b, j: (b, 0, 0)),
        ),
        compiler_params=pltpu.CompilerParams(
            dimension_semantics=("parallel", "arbitrary"),
            vmem_limit_bytes=vmem_limit),
    )(xr, yr)

    # Attention once per batch as a tiny XLA op (hoisted out of the per-tile apply).
    att = _host_attention(sums, 1.0 / float(HW), wfc,
                          bn_scale.astype(jnp.float32), bn_shift.astype(jnp.float32),
                          wfcs2, bfcs2, C)                              # (B, 2C, 1)

    # Pass 2: pure elementwise blend; both grid axes fully parallel.
    out = pl.pallas_call(
        _make_apply_kernel(C, blend_f32),
        out_shape=jax.ShapeDtypeStruct((B, C, HW), io_dtype),
        grid_spec=pltpu.PrefetchScalarGridSpec(
            num_scalar_prefetch=0,
            grid=(B, nt),
            in_specs=[
                pl.BlockSpec((1, 2 * C, 1), lambda b, j: (b, 0, 0)),    # attention
                pl.BlockSpec((1, C, t), lambda b, j: (b, 0, j)),        # x
                pl.BlockSpec((1, C, t), lambda b, j: (b, 0, j)),        # y
            ],
            out_specs=pl.BlockSpec((1, C, t), lambda b, j: (b, 0, j)),
        ),
        compiler_params=pltpu.CompilerParams(
            dimension_semantics=("parallel", "parallel"),
            vmem_limit_bytes=vmem_limit),
    )(att, xr, yr)
    return out.reshape(B, C, H, W)


# --------------------------------------------------------------------------------------
# Reference + tests
# --------------------------------------------------------------------------------------

def skconv_reference(x, y, w_fc, bn_scale, bn_shift, w_fcs, b_fcs):
    """Plain-JAX reference mirroring the PyTorch forward (eval-mode BN)."""
    hi = jax.lax.Precision.HIGHEST
    s = jnp.mean(x + y, axis=(2, 3))                                        # (B, C)
    z = jnp.maximum(jnp.dot(s, w_fc.T, precision=hi) * bn_scale + bn_shift, 0.0)
    a = jnp.einsum('bd,mcd->bmc', z, w_fcs, precision=hi) + b_fcs[None]     # (B, M, C)
    att = jax.nn.softmax(a, axis=1)
    feats = jnp.stack([x, y], axis=1)                                       # (B, M, C, H, W)
    return jnp.sum(feats * att[:, :, :, None, None], axis=1)


def _make_params(key, C, d, M):
    ks = jax.random.split(key, 7)
    w_fc = 0.5 * jax.random.normal(ks[0], (d, C), jnp.float32)
    gamma = 1.0 + 0.05 * jax.random.normal(ks[1], (d,), jnp.float32)
    beta = 0.1 * jax.random.normal(ks[2], (d,), jnp.float32)
    running_mean = 0.1 * jax.random.normal(ks[3], (d,), jnp.float32)
    running_var = 1.0 + jax.nn.softplus(jax.random.normal(ks[4], (d,), jnp.float32))
    eps = 1e-5
    inv_std = 1.0 / jnp.sqrt(running_var + eps)
    bn_scale = gamma * inv_std
    bn_shift = beta - running_mean * gamma * inv_std
    w_fcs = 0.5 * jax.random.normal(ks[5], (M, C, d), jnp.float32)
    b_fcs = 0.1 * jax.random.normal(ks[6], (M, C), jnp.float32)
    return w_fc, bn_scale, bn_shift, w_fcs, b_fcs


def _check(name, out, ref, atol, rtol):
    o = out.astype(jnp.float32)
    if not jnp.allclose(o, ref, atol=atol, rtol=rtol):
        raise AssertionError(
            f"{name}: mismatch, max|err| = {float(jnp.max(jnp.abs(o - ref)))}")


if __name__ == "__main__":
    # Shapes consistent with the module: features=64, M=2, r=16, L=32 -> d = 32.
    M, r, L = 2, 16, 32
    B, C, H, W = 2, 64, 16, 16          # HW = 256 -> lane-dense (2 x 128)
    d = int(max(C / r, L))              # 32

    key = jax.random.PRNGKey(0)
    kx, ky, kp, kx2, ky2 = jax.random.split(key, 5)
    x = jax.random.normal(kx, (B, C, H, W), jnp.float32)
    y = jax.random.normal(ky, (B, C, H, W), jnp.float32)
    params = _make_params(kp, C, d, M)

    ref = skconv_reference(x, y, *params)

    # 1) fused single-pass path, f32 I/O (exact softmax reciprocal -> tight tolerance)
    out = jax.block_until_ready(skconv_forward(x, y, *params))
    assert out.shape == (B, C, H, W) and out.dtype == jnp.float32
    _check("fused f32", out, ref, atol=5e-3, rtol=5e-3)

    # 2) HW-tiled two-pass path (forced), f32 I/O, even tiles
    out_t = jax.block_until_ready(
        skconv_forward(x, y, *params, force_tiled=True, hw_tile=128))
    _check("tiled f32", out_t, ref, atol=5e-3, rtol=5e-3)

    # 3) bf16 I/O (halves HBM traffic; blend runs in bf16 on v6e/v7x, f32 on v5e)
    xb, yb = x.astype(jnp.bfloat16), y.astype(jnp.bfloat16)
    ref_b = skconv_reference(xb.astype(jnp.float32), yb.astype(jnp.float32), *params)
    out_b = jax.block_until_ready(skconv_forward(xb, yb, *params))
    assert out_b.dtype == jnp.bfloat16
    _check("fused bf16", out_b, ref_b, atol=3e-2, rtol=3e-2)

    # 4) spatial size not a multiple of the lane width (HW = 144): fused path, plus the
    #    tiled path with a partial last tile (exercises the pl.when-gated lane masking).
    Ho, Wo = 12, 12
    xo = jax.random.normal(kx2, (B, C, Ho, Wo), jnp.float32)
    yo = jax.random.normal(ky2, (B, C, Ho, Wo), jnp.float32)
    ref_o = skconv_reference(xo, yo, *params)
    out_of = jax.block_until_ready(skconv_forward(xo, yo, *params))
    _check("fused f32 odd-HW", out_of, ref_o, atol=5e-3, rtol=5e-3)
    out_ot = jax.block_until_ready(
        skconv_forward(xo, yo, *params, force_tiled=True, hw_tile=128))
    _check("tiled f32 odd-HW", out_ot, ref_o, atol=5e-3, rtol=5e-3)

    # 5) bf16 tiled path (exercises the bf16 blend in the apply kernel on v6e/v7x)
    out_bt = jax.block_until_ready(
        skconv_forward(xb, yb, *params, force_tiled=True, hw_tile=128))
    _check("tiled bf16", out_bt, ref_b, atol=3e-2, rtol=3e-2)

    print("KERNEL_OK")
</pallas_src>

<mosaic_0001>
module attributes {stable_mosaic.version = 11 : i64} {
  func.func @kernel(%arg0: i32, %arg1: memref<1x64x256xf32, #tpu.memory_space<vmem>>, %arg2: memref<1x64x256xf32, #tpu.memory_space<vmem>>, %arg3: memref<32x64xf32, #tpu.memory_space<vmem>>, %arg4: memref<32x1xf32, #tpu.memory_space<vmem>>, %arg5: memref<32x1xf32, #tpu.memory_space<vmem>>, %arg6: memref<128x32xf32, #tpu.memory_space<vmem>>, %arg7: memref<128x1xf32, #tpu.memory_space<vmem>>, %arg8: memref<1x64x256xf32, #tpu.memory_space<vmem>>) attributes {dimension_semantics = [#tpu.dimension_semantics<parallel>], iteration_bounds = array<i64: 2>, scalar_prefetch = 0 : i64, scratch_operands = 0 : i64, tpu.core_type = #tpu.core_type<tc>, window_params = [{transform_indices = @transform_0, window_bounds = array<i64: 1, 64, 256>}, {transform_indices = @transform_1, window_bounds = array<i64: 1, 64, 256>}, {pipeline_mode = #tpu.pipeline_mode<synchronous>, transform_indices = @transform_2, window_bounds = array<i64: 32, 64>}, {pipeline_mode = #tpu.pipeline_mode<synchronous>, transform_indices = @transform_3, window_bounds = array<i64: 32, 1>}, {pipeline_mode = #tpu.pipeline_mode<synchronous>, transform_indices = @transform_4, window_bounds = array<i64: 32, 1>}, {pipeline_mode = #tpu.pipeline_mode<synchronous>, transform_indices = @transform_5, window_bounds = array<i64: 128, 32>}, {pipeline_mode = #tpu.pipeline_mode<synchronous>, transform_indices = @transform_6, window_bounds = array<i64: 128, 1>}, {transform_indices = @transform_7, window_bounds = array<i64: 1, 64, 256>}]} {
    %c0 = arith.constant 0 : index
    %c0_0 = arith.constant 0 : index
    %c0_1 = arith.constant 0 : index
    %0 = vector.load %arg1[%c0, %c0_0, %c0_1] : memref<1x64x256xf32, #tpu.memory_space<vmem>>, vector<1x64x256xf32>
    %1 = vector.shape_cast %0 : vector<1x64x256xf32> to vector<64x256xf32>
    %cst = arith.constant dense<0.000000e+00> : vector<64xf32>
    %2 = vector.multi_reduction <add>, %1, %cst [1] : vector<64x256xf32> to vector<64xf32>
    %3 = vector.shape_cast %2 : vector<64xf32> to vector<64x1xf32>
    %c0_2 = arith.constant 0 : index
    %c0_3 = arith.constant 0 : index
    %c0_4 = arith.constant 0 : index
    %4 = vector.load %arg2[%c0_2, %c0_3, %c0_4] : memref<1x64x256xf32, #tpu.memory_space<vmem>>, vector<1x64x256xf32>
    %5 = vector.shape_cast %4 : vector<1x64x256xf32> to vector<64x256xf32>
    %cst_5 = arith.constant dense<0.000000e+00> : vector<64xf32>
    %6 = vector.multi_reduction <add>, %5, %cst_5 [1] : vector<64x256xf32> to vector<64xf32>
    %7 = vector.shape_cast %6 : vector<64xf32> to vector<64x1xf32>
    %8 = arith.addf %3, %7 : vector<64x1xf32>
    %c0_6 = arith.constant 0 : index
    %c0_7 = arith.constant 0 : index
    %9 = vector.load %arg3[%c0_6, %c0_7] : memref<32x64xf32, #tpu.memory_space<vmem>>, vector<32x64xf32>
    %c0_8 = arith.constant 0 : index
    %c0_9 = arith.constant 0 : index
    %10 = vector.load %arg4[%c0_8, %c0_9] : memref<32x1xf32, #tpu.memory_space<vmem>>, vector<32x1xf32>
    %c0_10 = arith.constant 0 : index
    %c0_11 = arith.constant 0 : index
    %11 = vector.load %arg5[%c0_10, %c0_11] : memref<32x1xf32, #tpu.memory_space<vmem>>, vector<32x1xf32>
    %c0_12 = arith.constant 0 : index
    %c0_13 = arith.constant 0 : index
    %12 = vector.load %arg6[%c0_12, %c0_13] : memref<128x32xf32, #tpu.memory_space<vmem>>, vector<128x32xf32>
    %c0_14 = arith.constant 0 : index
    %c0_15 = arith.constant 0 : index
    %13 = vector.load %arg7[%c0_14, %c0_15] : memref<128x1xf32, #tpu.memory_space<vmem>>, vector<128x1xf32>
    %cst_16 = arith.constant 3.906250e-03 : f32
    %14 = vector.broadcast %cst_16 : f32 to vector<64x1xf32>
    %15 = arith.mulf %8, %14 : vector<64x1xf32>
    %cst_17 = arith.constant dense<0.000000e+00> : vector<32x1xf32>
    %16 = tpu.matmul %9, %15, %cst_17 {dimension_numbers = #tpu.dot_dimension_numbers<[1], [0], [0], [1], [0, 0, 1, 1], [], []>} : vector<32x64xf32>, vector<64x1xf32>, vector<32x1xf32> -> vector<32x1xf32>
    %17 = arith.mulf %16, %10 : vector<32x1xf32>
    %18 = arith.addf %17, %11 : vector<32x1xf32>
    %cst_18 = arith.constant 0.000000e+00 : f32
    %19 = vector.broadcast %cst_18 : f32 to vector<32x1xf32>
    %20 = arith.maximumf %18, %19 : vector<32x1xf32>
    %cst_19 = arith.constant dense<0.000000e+00> : vector<128x1xf32>
    %21 = tpu.matmul %12, %20, %cst_19 {dimension_numbers = #tpu.dot_dimension_numbers<[1], [0], [0], [1], [0, 0, 1, 1], [], []>} : vector<128x32xf32>, vector<32x1xf32>, vector<128x1xf32> -> vector<128x1xf32>
    %22 = arith.addf %21, %13 : vector<128x1xf32>
    %23 = vector.extract_strided_slice %22 {offsets = [0, 0], sizes = [64, 1], strides = [1, 1]} : vector<128x1xf32> to vector<64x1xf32>
    %24 = vector.extract_strided_slice %22 {offsets = [64, 0], sizes = [64, 1], strides = [1, 1]} : vector<128x1xf32> to vector<64x1xf32>
    %25 = arith.maximumf %23, %24 : vector<64x1xf32>
    %26 = arith.subf %23, %25 : vector<64x1xf32>
    %27 = math.exp %26 : vector<64x1xf32>
    %28 = arith.subf %24, %25 : vector<64x1xf32>
    %29 = math.exp %28 : vector<64x1xf32>
    %30 = arith.addf %27, %29 : vector<64x1xf32>
    %cst_20 = arith.constant 1.000000e+00 : f32
    %31 = vector.broadcast %cst_20 : f32 to vector<64x1xf32>
    %32 = arith.divf %31, %30 : vector<64x1xf32>
    %33 = arith.mulf %27, %32 : vector<64x1xf32>
    %34 = arith.mulf %29, %32 : vector<64x1xf32>
    %c0_21 = arith.constant 0 : index
    %c0_22 = arith.constant 0 : index
    %c0_23 = arith.constant 0 : index
    %35 = vector.load %arg1[%c0_21, %c0_22, %c0_23] : memref<1x64x256xf32, #tpu.memory_space<vmem>>, vector<1x64x256xf32>
    %36 = vector.shape_cast %35 : vector<1x64x256xf32> to vector<64x256xf32>
    %37 = vector.broadcast %33 : vector<64x1xf32> to vector<64x256xf32>
    %38 = arith.mulf %36, %37 : vector<64x256xf32>
    %c0_24 = arith.constant 0 : index
    %c0_25 = arith.constant 0 : index
    %c0_26 = arith.constant 0 : index
    %39 = vector.load %arg2[%c0_24, %c0_25, %c0_26] : memref<1x64x256xf32, #tpu.memory_space<vmem>>, vector<1x64x256xf32>
    %40 = vector.shape_cast %39 : vector<1x64x256xf32> to vector<64x256xf32>
    %41 = vector.broadcast %34 : vector<64x1xf32> to vector<64x256xf32>
    %42 = arith.mulf %40, %41 : vector<64x256xf32>
    %43 = arith.addf %38, %42 : vector<64x256xf32>
    %c0_27 = arith.constant 0 : index
    %c0_28 = arith.constant 0 : index
    %c0_29 = arith.constant 0 : index
    %44 = vector.load %arg8[%c0_27, %c0_28, %c0_29] : memref<1x64x256xf32, #tpu.memory_space<vmem>>, vector<1x64x256xf32>
    %45 = vector.shape_cast %44 : vector<1x64x256xf32> to vector<64x256xf32>
    %46 = vector.shape_cast %43 : vector<64x256xf32> to vector<1x64x256xf32>
    tpu.vector_store %arg8[%c0_27, %c0_28, %c0_29], %46 {strides = array<i32>} : memref<1x64x256xf32, #tpu.memory_space<vmem>>, vector<1x64x256xf32>,
    return
  }
  func.func @transform_0(%arg0: i32) -> (i32, i32, i32) {
    %c0_i32 = arith.constant 0 : i32
    %c0_i32_0 = arith.constant 0 : i32
    %c0_i32_1 = arith.constant 0 : i32
    return %arg0, %c0_i32, %c0_i32_0 : i32, i32, i32
  }
  func.func @transform_1(%arg0: i32) -> (i32, i32, i32) {
    %c0_i32 = arith.constant 0 : i32
    %c0_i32_0 = arith.constant 0 : i32
    %c0_i32_1 = arith.constant 0 : i32
    return %arg0, %c0_i32, %c0_i32_0 : i32, i32, i32
  }
  func.func @transform_2(%arg0: i32) -> (i32, i32) {
    %c0_i32 = arith.constant 0 : i32
    %c0_i32_0 = arith.constant 0 : i32
    %c0_i32_1 = arith.constant 0 : i32
    return %c0_i32, %c0_i32_0 : i32, i32
  }
  func.func @transform_3(%arg0: i32) -> (i32, i32) {
    %c0_i32 = arith.constant 0 : i32
    %c0_i32_0 = arith.constant 0 : i32
    %c0_i32_1 = arith.constant 0 : i32
    return %c0_i32, %c0_i32_0 : i32, i32
  }
  func.func @transform_4(%arg0: i32) -> (i32, i32) {
    %c0_i32 = arith.constant 0 : i32
    %c0_i32_0 = arith.constant 0 : i32
    %c0_i32_1 = arith.constant 0 : i32
    return %c0_i32, %c0_i32_0 : i32, i32
  }
  func.func @transform_5(%arg0: i32) -> (i32, i32) {
    %c0_i32 = arith.constant 0 : i32
    %c0_i32_0 = arith.constant 0 : i32
    %c0_i32_1 = arith.constant 0 : i32
    return %c0_i32, %c0_i32_0 : i32, i32
  }
  func.func @transform_6(%arg0: i32) -> (i32, i32) {
    %c0_i32 = arith.constant 0 : i32
    %c0_i32_0 = arith.constant 0 : i32
    %c0_i32_1 = arith.constant 0 : i32
    return %c0_i32, %c0_i32_0 : i32, i32
  }
  func.func @transform_7(%arg0: i32) -> (i32, i32, i32) {
    %c0_i32 = arith.constant 0 : i32
    %c0_i32_0 = arith.constant 0 : i32
    %c0_i32_1 = arith.constant 0 : i32
    return %arg0, %c0_i32, %c0_i32_0 : i32, i32, i32
  }
}

</mosaic_0001>

<llo_original>
// kernel: tpu_custom_call.1
$region0: #{tpu_custom_call.1}
  #allocation0 [shape = 'u32[]', space=smem, size = 0x4, offset = 0x4, fixed_abs, tag = 'smem constant byte address 0x4 - core index']
  #allocation1 [shape = 'u32[144,128]{1,0:T(1,128)}', space=vmem, size = 0x12000, scoped, tag = 'internal scratch']
  %s0 = inlined_call_operand.vmem [shape: f32[2,64,256], index: 0, kind: input, shape index: {}]
  %s1 = inlined_call_operand.hbm [shape: f32[2,64,256], index: 1, kind: input, shape index: {}]
  %s2 = inlined_call_operand.vmem [shape: f32[32,64], index: 2, kind: input, shape index: {}]
  %s3 = inlined_call_operand.vmem [shape: f32[32,1], index: 3, kind: input, shape index: {}]
  %s4 = inlined_call_operand.vmem [shape: f32[32,1], index: 4, kind: input, shape index: {}]
  %s5 = inlined_call_operand.vmem [shape: f32[128,32], index: 5, kind: input, shape index: {}]
  %s6 = inlined_call_operand.vmem [shape: f32[128,1], index: 6, kind: input, shape index: {}]
  %s7 = inlined_call_operand.hbm [shape: f32[2,64,256], index: 7, kind: output, shape index: {}]
  %s8 = sld [smem:[#allocation0]]
  $region65: #{tpu_custom_call.1} parent=0
    _
  %s10 = ssub.s32 1, %s8
  %s11 = scalar_select 0, %s10, %s8
  $region1: #{tpu_custom_call.1} parent=0
    #allocation2 [shape = 'u8[131072]{0}', space=vmem, size = 0x20000, scoped, tag = 'input window, operand 1']
    #allocation3 [shape = 's32[2]{0}', space=sflag, size = 0x8, scoped, tag = 'scoped memory for tpu_custom_call.1']
    #allocation4 [shape = 's32[2]{0}', space=sflag, size = 0x8, scoped, tag = 'scoped memory for tpu_custom_call.1']
    #allocation5 [shape = 'u8[131072]{0}', space=vmem, size = 0x20000, scoped, tag = 'output window, operand 0']
    %12 = vsyncpa [#allocation3], 0
    %s13 = scalar_lea.sflag [#allocation3], 1
    %14 = vsyncpa %s13, 0
    %15 = vsyncpa [#allocation4], 0
    %s16 = scalar_lea.sflag [#allocation4], 1
    %17 = vsyncpa %s16, 0
    loop: start=0, step=1, limit=4
    $region2: #{tpu_custom_call.1} parent=1 // loop_pre_header
      _
    $region3: #{tpu_custom_call.1} parent=1 // loop_header
      %s19 = sphi 0, %s23
      %p20 = scmp.ge.s32.totalorder %s19, 4
      %s29 = sphi 0, %s31
      %s32 = sphi 0, %s29
      %s33 = sphi 0, %s32
      %s49 = sphi 0, %s33
      %s55 = sphi 0, %s57
      %s58 = sphi 0, %s55
      %s59 = sphi 0, %s58
      %s75 = sphi 0, %s59
      %s79 = sphi 0, %s79
      %s81 = sphi 0, %s79
      %s82 = sphi 0, %s81
      %s96 = sphi 0, %s82
      %s100 = sphi 0, %s100
      %s102 = sphi 0, %s100
      %s103 = sphi 0, %s102
      %s117 = sphi 0, %s103
      %s121 = sphi 0, %s121
      %s123 = sphi 0, %s121
      %s124 = sphi 0, %s123
      %s138 = sphi 0, %s124
      %s142 = sphi 0, %s142
      %s144 = sphi 0, %s142
      %s145 = sphi 0, %s144
      %s159 = sphi 0, %s145
      %s163 = sphi 0, %s163
      %s165 = sphi 0, %s163
      %s166 = sphi 0, %s165
      %s180 = sphi 0, %s166
      %s186 = sphi 0, %s188
      %s189 = sphi 0, %s186
      %s190 = sphi 0, %s189
      %s206 = sphi 0, %s190
    $region4: #{tpu_custom_call.1} parent=1 // loop_header_branch
      %22 = sbr.rel (%p20) target = $region8
    $region5: #{tpu_custom_call.1} parent=1 // loop_body
      %s24 = ssub.s32 %s19, 1
      %s25 = ssub.s32 %s19, 2
      %s26 = sadd.s32 %s19, 1
      %s27 = ssub.s32 %s19, %s26
      %p28 = scmp.eq.s32.totalorder %s27, 0
      %s30 = sadd.s32 %s29, 1
      %s31 = scalar_select %p28, %s29, %s30
      %p34 = pneg %p28
      %p35 = scmp.eq.s32.totalorder %s19, 1
      %p36 = por %p34, %p35
      %p37 = scmp.ne.s32.totalorder %s29, %s32
      %p38 = scmp.eq.s32.totalorder %s19, 0
      %p39 = por %p37, %p38
      %p40 = scmp.ne.s32.totalorder %s29, %s32
      %p41 = scmp.eq.s32.totalorder %s24, 1
      %p42 = por %p40, %p41
      %p43 = scmp.ne.s32.totalorder %s32, %s33
      %p44 = scmp.eq.s32.totalorder %s24, 0
      %p45 = por %p43, %p44
      %p46 = scmp.ne.s32.totalorder %s32, %s33
      %p47 = scmp.eq.s32.totalorder %s25, 1
      %p48 = por %p46, %p47
      %p50 = scmp.ne.s32.totalorder %s33, %s49
      %p51 = scmp.eq.s32.totalorder %s25, 0
      %p52 = por %p50, %p51
      %s53 = ssub.s32 %s19, %s26
      %p54 = scmp.eq.s32.totalorder %s53, 0
      %s56 = sadd.s32 %s55, 1
      %s57 = scalar_select %p54, %s55, %s56
      %p60 = pneg %p54
      %p61 = scmp.eq.s32.totalorder %s19, 1
      %p62 = por %p60, %p61
      %p63 = scmp.ne.s32.totalorder %s55, %s58
      %p64 = scmp.eq.s32.totalorder %s19, 0
      %p65 = por %p63, %p64
      %p66 = scmp.ne.s32.totalorder %s55, %s58
      %p67 = scmp.eq.s32.totalorder %s24, 1
      %p68 = por %p66, %p67
      %p69 = scmp.ne.s32.totalorder %s58, %s59
      %p70 = scmp.eq.s32.totalorder %s24, 0
      %p71 = por %p69, %p70
      %p72 = scmp.ne.s32.totalorder %s58, %s59
      %p73 = scmp.eq.s32.totalorder %s25, 1
      %p74 = por %p72, %p73
      %p76 = scmp.ne.s32.totalorder %s59, %s75
      %p77 = scmp.eq.s32.totalorder %s25, 0
      %p78 = por %p76, %p77
      %s80 = sadd.s32 %s79, 1
      %p83 = scmp.eq.s32.totalorder %s19, 1
      %p84 = scmp.ne.s32.totalorder %s79, %s81
      %p85 = scmp.eq.s32.totalorder %s19, 0
      %p86 = por %p84, %p85
      %p87 = scmp.ne.s32.totalorder %s79, %s81
      %p88 = scmp.eq.s32.totalorder %s24, 1
      %p89 = por %p87, %p88
      %p90 = scmp.ne.s32.totalorder %s81, %s82
      %p91 = scmp.eq.s32.totalorder %s24, 0
      %p92 = por %p90, %p91
      %p93 = scmp.ne.s32.totalorder %s81, %s82
      %p94 = scmp.eq.s32.totalorder %s25, 1
      %p95 = por %p93, %p94
      %p97 = scmp.ne.s32.totalorder %s82, %s96
      %p98 = scmp.eq.s32.totalorder %s25, 0
      %p99 = por %p97, %p98
      %s101 = sadd.s32 %s100, 1
      %p104 = scmp.eq.s32.totalorder %s19, 1
      %p105 = scmp.ne.s32.totalorder %s100, %s102
      %p106 = scmp.eq.s32.totalorder %s19, 0
      %p107 = por %p105, %p106
      %p108 = scmp.ne.s32.totalorder %s100, %s102
      %p109 = scmp.eq.s32.totalorder %s24, 1
      %p110 = por %p108, %p109
      %p111 = scmp.ne.s32.totalorder %s102, %s103
      %p112 = scmp.eq.s32.totalorder %s24, 0
      %p113 = por %p111, %p112
      %p114 = scmp.ne.s32.totalorder %s102, %s103
      %p115 = scmp.eq.s32.totalorder %s25, 1
      %p116 = por %p114, %p115
      %p118 = scmp.ne.s32.totalorder %s103, %s117
      %p119 = scmp.eq.s32.totalorder %s25, 0
      %p120 = por %p118, %p119
      %s122 = sadd.s32 %s121, 1
      %p125 = scmp.eq.s32.totalorder %s19, 1
      %p126 = scmp.ne.s32.totalorder %s121, %s123
      %p127 = scmp.eq.s32.totalorder %s19, 0
      %p128 = por %p126, %p127
      %p129 = scmp.ne.s32.totalorder %s121, %s123
      %p130 = scmp.eq.s32.totalorder %s24, 1
      %p131 = por %p129, %p130
      %p132 = scmp.ne.s32.totalorder %s123, %s124
      %p133 = scmp.eq.s32.totalorder %s24, 0
      %p134 = por %p132, %p133
      %p135 = scmp.ne.s32.totalorder %s123, %s124
      %p136 = scmp.eq.s32.totalorder %s25, 1
      %p137 = por %p135, %p136
      %p139 = scmp.ne.s32.totalorder %s124, %s138
      %p140 = scmp.eq.s32.totalorder %s25, 0
      %p141 = por %p139, %p140
      %s143 = sadd.s32 %s142, 1
      %p146 = scmp.eq.s32.totalorder %s19, 1
      %p147 = scmp.ne.s32.totalorder %s142, %s144
      %p148 = scmp.eq.s32.totalorder %s19, 0
      %p149 = por %p147, %p148
      %p150 = scmp.ne.s32.totalorder %s142, %s144
      %p151 = scmp.eq.s32.totalorder %s24, 1
      %p152 = por %p150, %p151
      %p153 = scmp.ne.s32.totalorder %s144, %s145
      %p154 = scmp.eq.s32.totalorder %s24, 0
      %p155 = por %p153, %p154
      %p156 = scmp.ne.s32.totalorder %s144, %s145
      %p157 = scmp.eq.s32.totalorder %s25, 1
      %p158 = por %p156, %p157
      %p160 = scmp.ne.s32.totalorder %s145, %s159
      %p161 = scmp.eq.s32.totalorder %s25, 0
      %p162 = por %p160, %p161
      %s164 = sadd.s32 %s163, 1
      %p167 = scmp.eq.s32.totalorder %s19, 1
      %p168 = scmp.ne.s32.totalorder %s163, %s165
      %p169 = scmp.eq.s32.totalorder %s19, 0
      %p170 = por %p168, %p169
      %p171 = scmp.ne.s32.totalorder %s163, %s165
      %p172 = scmp.eq.s32.totalorder %s24, 1
      %p173 = por %p171, %p172
      %p174 = scmp.ne.s32.totalorder %s165, %s166
      %p175 = scmp.eq.s32.totalorder %s24, 0
      %p176 = por %p174, %p175
      %p177 = scmp.ne.s32.totalorder %s165, %s166
      %p178 = scmp.eq.s32.totalorder %s25, 1
      %p179 = por %p177, %p178
      %p181 = scmp.ne.s32.totalorder %s166, %s180
      %p182 = scmp.eq.s32.totalorder %s25, 0
      %p183 = por %p181, %p182
      %s184 = ssub.s32 %s19, %s26
      %p185 = scmp.eq.s32.totalorder %s184, 0
      %s187 = sadd.s32 %s186, 1
      %s188 = scalar_select %p185, %s186, %s187
      %p191 = pneg %p185
      %p192 = scmp.eq.s32.totalorder %s19, 1
      %p193 = por %p191, %p192
      %p194 = scmp.ne.s32.totalorder %s186, %s189
      %p195 = scmp.eq.s32.totalorder %s19, 0
      %p196 = por %p194, %p195
      %p197 = scmp.ne.s32.totalorder %s186, %s189
      %p198 = scmp.eq.s32.totalorder %s24, 1
      %p199 = por %p197, %p198
      %p200 = scmp.ne.s32.totalorder %s189, %s190
      %p201 = scmp.eq.s32.totalorder %s24, 0
      %p202 = por %p200, %p201
      %p203 = scmp.ne.s32.totalorder %s189, %s190
      %p204 = scmp.eq.s32.totalorder %s25, 1
      %p205 = por %p203, %p204
      %p207 = scmp.ne.s32.totalorder %s190, %s206
      %p208 = scmp.eq.s32.totalorder %s25, 0
      %p209 = por %p207, %p208
      %p210 = scmp.le.s32.totalorder 1, %s19
      %p211 = scmp.lt.s32.totalorder %s19, 3
      %p212 = pnand %p210, %p211
      %p213 = pneg %p212
      // Predicated region
      $region9: #{tpu_custom_call.1} parent=5 // pred_check
        _
      $region10: #{tpu_custom_call.1} parent=5 // pred_check_branch
        %215 = sbr.rel (%p212) target = $region12
      $region11: #{tpu_custom_call.1} parent=5 // pred_region
        %s216 = ssub.s32 %s19, 1
        // Predicated region
        $region13: #{tpu_custom_call.1} parent=11 // pred_check
          %p217 = pneg %p92
        $region14: #{tpu_custom_call.1} parent=11 // pred_check_branch
          %219 = sbr.rel (%p217) target = $region16
        $region15: #{tpu_custom_call.1} parent=11 // pred_region
          _
        $region16: #{tpu_custom_call.1} parent=11 // pred_fallthru
          _
        // Predicated region
        $region17: #{tpu_custom_call.1} parent=11 // pred_check
          %p220 = pneg %p113
        $region18: #{tpu_custom_call.1} parent=11 // pred_check_branch
          %222 = sbr.rel (%p220) target = $region20
        $region19: #{tpu_custom_call.1} parent=11 // pred_region
          _
        $region20: #{tpu_custom_call.1} parent=11 // pred_fallthru
          _
        // Predicated region
        $region21: #{tpu_custom_call.1} parent=11 // pred_check
          %p223 = pneg %p134
        $region22: #{tpu_custom_call.1} parent=11 // pred_check_branch
          %225 = sbr.rel (%p223) target = $region24
        $region23: #{tpu_custom_call.1} parent=11 // pred_region
          _
        $region24: #{tpu_custom_call.1} parent=11 // pred_fallthru
          _
        // Predicated region
        $region25: #{tpu_custom_call.1} parent=11 // pred_check
          %p226 = pneg %p155
        $region26: #{tpu_custom_call.1} parent=11 // pred_check_branch
          %228 = sbr.rel (%p226) target = $region28
        $region27: #{tpu_custom_call.1} parent=11 // pred_region
          _
        $region28: #{tpu_custom_call.1} parent=11 // pred_fallthru
          _
        // Predicated region
        $region29: #{tpu_custom_call.1} parent=11 // pred_check
          %p229 = pneg %p176
        $region30: #{tpu_custom_call.1} parent=11 // pred_check_branch
          %231 = sbr.rel (%p229) target = $region32
        $region31: #{tpu_custom_call.1} parent=11 // pred_region
          _
        $region32: #{tpu_custom_call.1} parent=11 // pred_fallthru
          _
      $region12: #{tpu_custom_call.1} parent=5 // pred_fallthru
        _
      %p232 = scmp.lt.s32.totalorder %s19, 2
      // Predicated region
      $region33: #{tpu_custom_call.1} parent=5 // pred_check
        %p233 = pneg %p232
      $region34: #{tpu_custom_call.1} parent=5 // pred_check_branch
        %235 = sbr.rel (%p233) target = $region36
      $region35: #{tpu_custom_call.1} parent=5 // pred_region
        // Predicated region
        $region37: #{tpu_custom_call.1} parent=35 // pred_check
          %p236 = pneg %p39
        $region38: #{tpu_custom_call.1} parent=35 // pred_check_branch
          %238 = sbr.rel (%p236) target = $region40
        $region39: #{tpu_custom_call.1} parent=35 // pred_region
          %p239 = scmp.lt.s32.totalorder %s19, 1
          %s240 = scalar_select %p239, %s19, 1
          %s241 = smul.addr %s240, 16
          %s242 = smul.addr %s241, 8
          %s243 = scalar_lea.vmem %s0, %s242
        $region40: #{tpu_custom_call.1} parent=35 // pred_fallthru
          _
        // Predicated region
        $region41: #{tpu_custom_call.1} parent=35 // pred_check
          %p244 = pneg %p65
        $region42: #{tpu_custom_call.1} parent=35 // pred_check_branch
          %246 = sbr.rel (%p244) target = $region44
        $region43: #{tpu_custom_call.1} parent=35 // pred_region
          %s247 = sand.u32 %s55, 1
          %s248 = scalar_lea.sflag [#allocation3], %s247
          %s249 = sand.u32 %s55, 1
          %s250 = smul.addr %s249, 128
          %s251 = scalar_lea.vmem [#allocation2], %s250
          %s253 = ssub.s32 2048, 2048
          %254 = vsyncadd %s248, %s253
          %s255 = smul.addr %s19, 16
          %s256 = smul.addr %s255, 128
          %s257 = scalar_lea.hbm %s1, %s256
          %s258 = sshll.u32 %s251, 4
          %s259 = int_to_ptr.vmem [resolvable:$true] %s258
          %264 = dma.hbm_to_vmem [thread:$0]  %s257, 2048, %s259, %s248, 256, 256, 16
        $region44: #{tpu_custom_call.1} parent=35 // pred_fallthru
          _
      $region36: #{tpu_custom_call.1} parent=5 // pred_fallthru
        _
      %p265 = scmp.le.s32.totalorder 1, %s19
      %p266 = scmp.lt.s32.totalorder %s19, 3
      %p267 = pnand %p265, %p266
      %p268 = pneg %p267
      // Predicated region
      $region45: #{tpu_custom_call.1} parent=5 // pred_check
        _
      $region46: #{tpu_custom_call.1} parent=5 // pred_check_branch
        %270 = sbr.rel (%p267) target = $region48
      $region47: #{tpu_custom_call.1} parent=5 // pred_region
        %s271 = ssub.s32 %s19, 1
        %s272 = sand.u32 %s58, 1
        %s273 = scalar_lea.sflag [#allocation3], %s272
        %s274 = sand.u32 %s58, 1
        %s275 = smul.addr %s274, 128
        %s276 = scalar_lea.vmem [#allocation2], %s275
        // Predicated region
        $region49: #{tpu_custom_call.1} parent=47 // pred_check
          %p277 = pneg %p71
        $region50: #{tpu_custom_call.1} parent=47 // pred_check_branch
          %279 = sbr.rel (%p277) target = $region52
        $region51: #{tpu_custom_call.1} parent=47 // pred_region
          %280 = dma.done %s273, 2048
        $region52: #{tpu_custom_call.1} parent=47 // pred_fallthru
          _
        %p281 = scmp.lt.s32.totalorder %s24, 1
        %s282 = scalar_select %p281, %s24, 1
        %s283 = smul.addr %s282, 16
        %s284 = smul.addr %s283, 8
        %s285 = scalar_lea.vmem %s0, %s284
        %p286 = pneg %p45
        %p287 = pneg %p42
        %s288 = sand.u32 %s58, 1
        %s289 = scalar_lea.sflag [#allocation3], %s288
        %s290 = sand.u32 %s58, 1
        %s291 = smul.addr %s290, 128
        %s292 = scalar_lea.vmem [#allocation2], %s291
        %p293 = pneg %p71
        %p294 = pneg %p68
        %p295 = pneg %p92
        %p296 = pneg %p89
        %p297 = pneg %p113
        %p298 = pneg %p110
        %p299 = pneg %p134
        %p300 = pneg %p131
        %p301 = pneg %p155
        %p302 = pneg %p152
        %p303 = pneg %p176
        %p304 = pneg %p173
        %p305 = pneg %p202
        %p306 = pneg %p199
        %s307 = sand.u32 %s189, 1
        %s308 = scalar_lea.sflag [#allocation4], %s307
        %s309 = sand.u32 %s189, 1
        %s310 = smul.addr %s309, 128
        %s311 = scalar_lea.vmem [#allocation5], %s310
        %p312 = scmp.lt.s32.totalorder %s24, 1
        %s313 = scalar_select %p312, %s24, 1
        %s314 = smul.addr %s313, 16
        %s315 = smul.addr %s314, 8
        %s316 = scalar_lea.vmem %s0, %s315
        %v317 = vld [vmem:[%s316] sm:$0xff]
        %v318 = vld [vmem:[%s316 + $0x8] sm:$0xff]
        %v319 = vld [vmem:[%s316 + $0x10] sm:$0xff]
        %v320 = vld [vmem:[%s316 + $0x18] sm:$0xff]
        %v321 = vld [vmem:[%s316 + $0x20] sm:$0xff]
        %v322 = vld [vmem:[%s316 + $0x28] sm:$0xff]
        %v323 = vld [vmem:[%s316 + $0x30] sm:$0xff]
        %v324 = vld [vmem:[%s316 + $0x38] sm:$0xff]
        %v325 = vld [vmem:[%s316 + $0x40] sm:$0xff]
        %v326 = vld [vmem:[%s316 + $0x48] sm:$0xff]
        %v327 = vld [vmem:[%s316 + $0x50] sm:$0xff]
        %v328 = vld [vmem:[%s316 + $0x58] sm:$0xff]
        %v329 = vld [vmem:[%s316 + $0x60] sm:$0xff]
        %v330 = vld [vmem:[%s316 + $0x68] sm:$0xff]
        %v331 = vld [vmem:[%s316 + $0x70] sm:$0xff]
        %v332 = vld [vmem:[%s316 + $0x78] sm:$0xff]
        %v333 = vadd.f32 %v317, %v318
        %334 = vadd.xlane.f32.xlu0 %v333
        %v335 = vpop.xlane.xlu0 %334
        %v336 = vadd.f32 %v319, %v320
        %337 = vadd.xlane.f32.xlu0 %v336
        %v338 = vpop.xlane.xlu0 %337
        %v339 = vadd.f32 %v321, %v322
        %340 = vadd.xlane.f32.xlu0 %v339
        %v341 = vpop.xlane.xlu0 %340
        %v342 = vadd.f32 %v323, %v324
        %343 = vadd.xlane.f32.xlu0 %v342
        %v344 = vpop.xlane.xlu0 %343
        %v345 = vadd.f32 %v325, %v326
        %346 = vadd.xlane.f32.xlu0 %v345
        %v347 = vpop.xlane.xlu0 %346
        %v348 = vadd.f32 %v327, %v328
        %349 = vadd.xlane.f32.xlu0 %v348
        %v350 = vpop.xlane.xlu0 %349
        %v351 = vadd.f32 %v329, %v330
        %352 = vadd.xlane.f32.xlu0 %v351
        %v353 = vpop.xlane.xlu0 %352
        %v354 = vadd.f32 %v331, %v332
        %355 = vadd.xlane.f32.xlu0 %v354
        %v356 = vpop.xlane.xlu0 %355
        %v357 = vld [vmem:[%s276] sm:$0xff]
        %v358 = vld [vmem:[%s276 + $0x8] sm:$0xff]
        %v359 = vld [vmem:[%s276 + $0x10] sm:$0xff]
        %v360 = vld [vmem:[%s276 + $0x18] sm:$0xff]
        %v361 = vld [vmem:[%s276 + $0x20] sm:$0xff]
        %v362 = vld [vmem:[%s276 + $0x28] sm:$0xff]
        %v363 = vld [vmem:[%s276 + $0x30] sm:$0xff]
        %v364 = vld [vmem:[%s276 + $0x38] sm:$0xff]
        %v365 = vld [vmem:[%s276 + $0x40] sm:$0xff]
        %v366 = vld [vmem:[%s276 + $0x48] sm:$0xff]
        %v367 = vld [vmem:[%s276 + $0x50] sm:$0xff]
        %v368 = vld [vmem:[%s276 + $0x58] sm:$0xff]
        %v369 = vld [vmem:[%s276 + $0x60] sm:$0xff]
        %v370 = vld [vmem:[%s276 + $0x68] sm:$0xff]
        %v371 = vld [vmem:[%s276 + $0x70] sm:$0xff]
        %v372 = vld [vmem:[%s276 + $0x78] sm:$0xff]
        %v373 = vadd.f32 %v357, %v358
        %374 = vadd.xlane.f32.xlu0 %v373
        %v375 = vpop.xlane.xlu0 %374
        %v376 = vadd.f32 %v359, %v360
        %377 = vadd.xlane.f32.xlu0 %v376
        %v378 = vpop.xlane.xlu0 %377
        %v379 = vadd.f32 %v361, %v362
        %380 = vadd.xlane.f32.xlu0 %v379
        %v381 = vpop.xlane.xlu0 %380
        %v382 = vadd.f32 %v363, %v364
        %383 = vadd.xlane.f32.xlu0 %v382
        %v384 = vpop.xlane.xlu0 %383
        %v385 = vadd.f32 %v365, %v366
        %386 = vadd.xlane.f32.xlu0 %v385
        %v387 = vpop.xlane.xlu0 %386
        %v388 = vadd.f32 %v367, %v368
        %389 = vadd.xlane.f32.xlu0 %v388
        %v390 = vpop.xlane.xlu0 %389
        %v391 = vadd.f32 %v369, %v370
        %392 = vadd.xlane.f32.xlu0 %v391
        %v393 = vpop.xlane.xlu0 %392
        %v394 = vadd.f32 %v371, %v372
        %395 = vadd.xlane.f32.xlu0 %v394
        %v396 = vpop.xlane.xlu0 %395
        %v397 = vadd.f32 %v335, %v375
        %v398 = vadd.f32 %v338, %v378
        %v399 = vadd.f32 %v341, %v381
        %v400 = vadd.f32 %v344, %v384
        %v401 = vadd.f32 %v347, %v387
        %v402 = vadd.f32 %v350, %v390
        %v403 = vadd.f32 %v353, %v393
        %v404 = vadd.f32 %v356, %v396
        %v405 = vld [vmem:[%s2] sm:$0xff]
        %v406 = vld [vmem:[%s2 + $0x8] sm:$0xff]
        %v407 = vld [vmem:[%s2 + $0x10] sm:$0xff]
        %v408 = vld [vmem:[%s2 + $0x18] sm:$0xff]
        %v409 = vld [vmem:[%s3] sm:$0xff]
        %v410 = vld [vmem:[%s3 + $0x8] sm:$0xff]
        %v411 = vld [vmem:[%s3 + $0x10] sm:$0xff]
        %v412 = vld [vmem:[%s3 + $0x18] sm:$0xff]
        %v413 = vld [vmem:[%s4] sm:$0xff]
        %v414 = vld [vmem:[%s4 + $0x8] sm:$0xff]
        %v415 = vld [vmem:[%s4 + $0x10] sm:$0xff]
        %v416 = vld [vmem:[%s4 + $0x18] sm:$0xff]
        %v417 = vld [vmem:[%s5] sm:$0xff]
        %v418 = vld [vmem:[%s5 + $0x8] sm:$0xff]
        %v419 = vld [vmem:[%s5 + $0x10] sm:$0xff]
        %v420 = vld [vmem:[%s5 + $0x18] sm:$0xff]
        %v421 = vld [vmem:[%s5 + $0x20] sm:$0xff]
        %v422 = vld [vmem:[%s5 + $0x28] sm:$0xff]
        %v423 = vld [vmem:[%s5 + $0x30] sm:$0xff]
        %v424 = vld [vmem:[%s5 + $0x38] sm:$0xff]
        %v425 = vld [vmem:[%s5 + $0x40] sm:$0xff]
        %v426 = vld [vmem:[%s5 + $0x48] sm:$0xff]
        %v427 = vld [vmem:[%s5 + $0x50] sm:$0xff]
        %v428 = vld [vmem:[%s5 + $0x58] sm:$0xff]
        %v429 = vld [vmem:[%s5 + $0x60] sm:$0xff]
        %v430 = vld [vmem:[%s5 + $0x68] sm:$0xff]
        %v431 = vld [vmem:[%s5 + $0x70] sm:$0xff]
        %v432 = vld [vmem:[%s5 + $0x78] sm:$0xff]
        %v433 = vld [vmem:[%s6] sm:$0xff]
        %v434 = vld [vmem:[%s6 + $0x8] sm:$0xff]
        %v435 = vld [vmem:[%s6 + $0x10] sm:$0xff]
        %v436 = vld [vmem:[%s6 + $0x18] sm:$0xff]
        %v437 = vld [vmem:[%s6 + $0x20] sm:$0xff]
        %v438 = vld [vmem:[%s6 + $0x28] sm:$0xff]
        %v439 = vld [vmem:[%s6 + $0x30] sm:$0xff]
        %v440 = vld [vmem:[%s6 + $0x38] sm:$0xff]
        %v441 = vld [vmem:[%s6 + $0x40] sm:$0xff]
        %v442 = vld [vmem:[%s6 + $0x48] sm:$0xff]
        %v443 = vld [vmem:[%s6 + $0x50] sm:$0xff]
        %v444 = vld [vmem:[%s6 + $0x58] sm:$0xff]
        %v445 = vld [vmem:[%s6 + $0x60] sm:$0xff]
        %v446 = vld [vmem:[%s6 + $0x68] sm:$0xff]
        %v447 = vld [vmem:[%s6 + $0x70] sm:$0xff]
        %v448 = vld [vmem:[%s6 + $0x78] sm:$0xff]
        %v449 = vmul.f32 %v397, 0.00390625
        %v450 = vmul.f32 %v398, 0.00390625
        %v451 = vmul.f32 %v399, 0.00390625
        %v452 = vmul.f32 %v400, 0.00390625
        %v453 = vmul.f32 %v401, 0.00390625
        %v454 = vmul.f32 %v402, 0.00390625
        %v455 = vmul.f32 %v403, 0.00390625
        %v456 = vmul.f32 %v404, 0.00390625
        %vm457 = vcmask 523264
        %v459 = vsel %vm457, %v405, 0
        %v462 = vsel %vm457, %v406, 0
        %v465 = vsel %vm457, %v407, 0
        %v468 = vsel %vm457, %v408, 0
        %470 = vmatprep.subr.mxu0 0.0
        %471 = vmatpush1.msra.mxu0 0.0
        %472 = vmatprep.subr.mxu0 0.0
        %473 = vmatpush1.msra.mxu0 0.0
        %474 = vmatprep.subr.mxu0 0.0
        %475 = vmatpush1.msra.mxu0 0.0
        %476 = vmatprep.subr.mxu0 0.0
        %477 = vmatpush1.msra.mxu0 0.0
        %478 = vmatprep.subr.mxu0 0.0
        %479 = vmatpush1.msra.mxu0 0.0
        %480 = vmatprep.subr.mxu0 0.0
        %481 = vmatpush1.msra.mxu0 0.0
        %482 = vmatprep.subr.mxu0 0.0
        %483 = vmatpush1.msra.mxu0 0.0
        %484 = vmatprep.subr.mxu0 0.0
        %485 = vmatpush1.msra.mxu0 0.0
        %486 = vmatprep.subr.mxu0 0.0
        %487 = vmatpush1.msra.mxu0 %v456
        %488 = vmatprep.subr.mxu0 0.0
        %489 = vmatpush1.msra.mxu0 %v455
        %490 = vmatprep.subr.mxu0 0.0
        %491 = vmatpush1.msra.mxu0 %v454
        %492 = vmatprep.subr.mxu0 0.0
        %493 = vmatpush1.msra.mxu0 %v453
        %494 = vmatprep.subr.mxu0 0.0
        %495 = vmatpush1.msra.mxu0 %v452
        %496 = vmatprep.subr.mxu0 0.0
        %497 = vmatpush1.msra.mxu0 %v451
        %498 = vmatprep.subr.mxu0 0.0
        %499 = vmatpush1.msra.mxu0 %v450
        %500 = vmatprep.subr.mxu0 0.0
        %501 = vmatpush1.msra.mxu0 %v449
        %502 = vmatprep.subr.mxu0 0.0
        %503 = vmatpush2.msra.mxu0 0.0
        %504 = vmatprep.subr.mxu0 0.0
        %505 = vmatpush2.msra.mxu0 0.0
        %506 = vmatprep.subr.mxu0 0.0
        %507 = vmatpush2.msra.mxu0 0.0
        %508 = vmatprep.subr.mxu0 0.0
        %509 = vmatpush2.msra.mxu0 0.0
        %510 = vmatprep.subr.mxu0 0.0
        %511 = vmatpush2.msra.mxu0 0.0
        %512 = vmatprep.subr.mxu0 0.0
        %513 = vmatpush2.msra.mxu0 0.0
        %514 = vmatprep.subr.mxu0 0.0
        %515 = vmatpush2.msra.mxu0 0.0
        %516 = vmatprep.subr.mxu0 0.0
        %517 = vmatpush2.msra.mxu0 0.0
        %518 = vmatprep.subr.mxu0 0.0
        %519 = vmatpush2.msra.mxu0 0.0
        %520 = vmatprep.subr.mxu0 0.0
        %521 = vmatpush2.msra.mxu0 0.0
        %522 = vmatprep.subr.mxu0 0.0
        %523 = vmatpush2.msra.mxu0 0.0
        %524 = vmatprep.subr.mxu0 0.0
        %525 = vmatpush2.msra.mxu0 0.0
        %526 = vmatprep.subr.mxu0 0.0
        %527 = vmatpush2.msra.mxu0 0.0
        %528 = vmatprep.subr.mxu0 0.0
        %529 = vmatpush2.msra.mxu0 0.0
        %530 = vmatprep.subr.mxu0 0.0
        %531 = vmatpush2.msra.mxu0 0.0
        %532 = vmatprep.subr.mxu0 0.0
        %533 = vmatpush2.msra.mxu0 0.0
        %534 = vmatprep.mubr.f32.mxu0 0.0
        %535 = vmatmul.mubr.f32.gmra.mxu0 %v459
        %v536 = vpop.f32.mrf.mxu0
        %v537 = vadd.f32 0.0, %v536
        %v538 = vpop.f32.mrf.mxu0
        %539 = vmatprep.mubr.f32.mxu0 0.0
        %540 = vmatmul.mubr.f32.gmra.mxu0 %v462
        %v541 = vpop.f32.mrf.mxu0
        %v542 = vadd.f32 0.0, %v541
        %v543 = vpop.f32.mrf.mxu0
        %544 = vmatprep.mubr.f32.mxu0 0.0
        %545 = vmatmul.mubr.f32.gmra.mxu0 %v465
        %v546 = vpop.f32.mrf.mxu0
        %v547 = vadd.f32 0.0, %v546
        %v548 = vpop.f32.mrf.mxu0
        %549 = vmatprep.mubr.f32.mxu0 0.0
        %550 = vmatmul.mubr.f32.gmra.mxu0 %v468
        %v551 = vpop.f32.mrf.mxu0
        %v552 = vadd.f32 0.0, %v551
        %v553 = vpop.f32.mrf.mxu0
        %554 = vdwg.mxu0
        %v555 = vmul.f32 %v537, %v409
        %v556 = vmul.f32 %v542, %v410
        %v557 = vmul.f32 %v547, %v411
        %v558 = vmul.f32 %v552, %v412
        %v559 = vadd.f32 %v555, %v413
        %v560 = vadd.f32 %v556, %v414
        %v561 = vadd.f32 %v557, %v415
        %v562 = vadd.f32 %v558, %v416
        %v563 = vmax.f32 %v559, 0.0
        %v564 = vmax.f32 %v560, 0.0
        %v565 = vmax.f32 %v561, 0.0
        %v566 = vmax.f32 %v562, 0.0
        %vm567 = vcmask 261120
        %v569 = vsel %vm567, %v417, 0
        %v572 = vsel %vm567, %v418, 0
        %v575 = vsel %vm567, %v419, 0
        %v578 = vsel %vm567, %v420, 0
        %v581 = vsel %vm567, %v421, 0
        %v584 = vsel %vm567, %v422, 0
        %v587 = vsel %vm567, %v423, 0
        %v590 = vsel %vm567, %v424, 0
        %v593 = vsel %vm567, %v425, 0
        %v596 = vsel %vm567, %v426, 0
        %v599 = vsel %vm567, %v427, 0
        %v602 = vsel %vm567, %v428, 0
        %v605 = vsel %vm567, %v429, 0
        %v608 = vsel %vm567, %v430, 0
        %v611 = vsel %vm567, %v431, 0
        %v614 = vsel %vm567, %v432, 0
        %616 = vmatprep.subr.mxu0 0.0
        %617 = vmatpush1.msra.mxu0 0.0
        %618 = vmatprep.subr.mxu0 0.0
        %619 = vmatpush1.msra.mxu0 0.0
        %620 = vmatprep.subr.mxu0 0.0
        %621 = vmatpush1.msra.mxu0 0.0
        %622 = vmatprep.subr.mxu0 0.0
        %623 = vmatpush1.msra.mxu0 0.0
        %624 = vmatprep.subr.mxu0 0.0
        %625 = vmatpush1.msra.mxu0 0.0
        %626 = vmatprep.subr.mxu0 0.0
        %627 = vmatpush1.msra.mxu0 0.0
        %628 = vmatprep.subr.mxu0 0.0
        %629 = vmatpush1.msra.mxu0 0.0
        %630 = vmatprep.subr.mxu0 0.0
        %631 = vmatpush1.msra.mxu0 0.0
        %632 = vmatprep.subr.mxu0 0.0
        %633 = vmatpush1.msra.mxu0 0.0
        %634 = vmatprep.subr.mxu0 0.0
        %635 = vmatpush1.msra.mxu0 0.0
        %636 = vmatprep.subr.mxu0 0.0
        %637 = vmatpush1.msra.mxu0 0.0
        %638 = vmatprep.subr.mxu0 0.0
        %639 = vmatpush1.msra.mxu0 0.0
        %640 = vmatprep.subr.mxu0 0.0
        %641 = vmatpush1.msra.mxu0 %v566
        %642 = vmatprep.subr.mxu0 0.0
        %643 = vmatpush1.msra.mxu0 %v565
        %644 = vmatprep.subr.mxu0 0.0
        %645 = vmatpush1.msra.mxu0 %v564
        %646 = vmatprep.subr.mxu0 0.0
        %647 = vmatpush1.msra.mxu0 %v563
        %648 = vmatprep.subr.mxu0 0.0
        %649 = vmatpush2.msra.mxu0 0.0
        %650 = vmatprep.subr.mxu0 0.0
        %651 = vmatpush2.msra.mxu0 0.0
        %652 = vmatprep.subr.mxu0 0.0
        %653 = vmatpush2.msra.mxu0 0.0
        %654 = vmatprep.subr.mxu0 0.0
        %655 = vmatpush2.msra.mxu0 0.0
        %656 = vmatprep.subr.mxu0 0.0
        %657 = vmatpush2.msra.mxu0 0.0
        %658 = vmatprep.subr.mxu0 0.0
        %659 = vmatpush2.msra.mxu0 0.0
        %660 = vmatprep.subr.mxu0 0.0
        %661 = vmatpush2.msra.mxu0 0.0
        %662 = vmatprep.subr.mxu0 0.0
        %663 = vmatpush2.msra.mxu0 0.0
        %664 = vmatprep.subr.mxu0 0.0
        %665 = vmatpush2.msra.mxu0 0.0
        %666 = vmatprep.subr.mxu0 0.0
        %667 = vmatpush2.msra.mxu0 0.0
        %668 = vmatprep.subr.mxu0 0.0
        %669 = vmatpush2.msra.mxu0 0.0
        %670 = vmatprep.subr.mxu0 0.0
        %671 = vmatpush2.msra.mxu0 0.0
        %672 = vmatprep.subr.mxu0 0.0
        %673 = vmatpush2.msra.mxu0 0.0
        %674 = vmatprep.subr.mxu0 0.0
        %675 = vmatpush2.msra.mxu0 0.0
        %676 = vmatprep.subr.mxu0 0.0
        %677 = vmatpush2.msra.mxu0 0.0
        %678 = vmatprep.subr.mxu0 0.0
        %679 = vmatpush2.msra.mxu0 0.0
        %680 = vmatprep.mubr.f32.mxu0 0.0
        %681 = vmatmul.mubr.f32.gmra.mxu0 %v569
        %v682 = vpop.f32.mrf.mxu0
        %v683 = vadd.f32 %v433, %v682
        %v684 = vpop.f32.mrf.mxu0
        %685 = vmatprep.mubr.f32.mxu0 0.0
        %686 = vmatmul.mubr.f32.gmra.mxu0 %v572
        %v687 = vpop.f32.mrf.mxu0
        %v688 = vadd.f32 %v434, %v687
        %v689 = vpop.f32.mrf.mxu0
        %690 = vmatprep.mubr.f32.mxu0 0.0
        %691 = vmatmul.mubr.f32.gmra.mxu0 %v575
        %v692 = vpop.f32.mrf.mxu0
        %v693 = vadd.f32 %v435, %v692
        %v694 = vpop.f32.mrf.mxu0
        %695 = vmatprep.mubr.f32.mxu0 0.0
        %696 = vmatmul.mubr.f32.gmra.mxu0 %v578
        %v697 = vpop.f32.mrf.mxu0
        %v698 = vadd.f32 %v436, %v697
        %v699 = vpop.f32.mrf.mxu0
        %700 = vmatprep.mubr.f32.mxu0 0.0
        %701 = vmatmul.mubr.f32.gmra.mxu0 %v581
        %v702 = vpop.f32.mrf.mxu0
        %v703 = vadd.f32 %v437, %v702
        %v704 = vpop.f32.mrf.mxu0
        %705 = vmatprep.mubr.f32.mxu0 0.0
        %706 = vmatmul.mubr.f32.gmra.mxu0 %v584
        %v707 = vpop.f32.mrf.mxu0
        %v708 = vadd.f32 %v438, %v707
        %v709 = vpop.f32.mrf.mxu0
        %710 = vmatprep.mubr.f32.mxu0 0.0
        %711 = vmatmul.mubr.f32.gmra.mxu0 %v587
        %v712 = vpop.f32.mrf.mxu0
        %v713 = vadd.f32 %v439, %v712
        %v714 = vpop.f32.mrf.mxu0
        %715 = vmatprep.mubr.f32.mxu0 0.0
        %716 = vmatmul.mubr.f32.gmra.mxu0 %v590
        %v717 = vpop.f32.mrf.mxu0
        %v718 = vadd.f32 %v440, %v717
        %v719 = vpop.f32.mrf.mxu0
        %720 = vmatprep.mubr.f32.mxu0 0.0
        %721 = vmatmul.mubr.f32.gmra.mxu0 %v593
        %v722 = vpop.f32.mrf.mxu0
        %v723 = vadd.f32 %v441, %v722
        %v724 = vpop.f32.mrf.mxu0
        %725 = vmatprep.mubr.f32.mxu0 0.0
        %726 = vmatmul.mubr.f32.gmra.mxu0 %v596
        %v727 = vpop.f32.mrf.mxu0
        %v728 = vadd.f32 %v442, %v727
        %v729 = vpop.f32.mrf.mxu0
        %730 = vmatprep.mubr.f32.mxu0 0.0
        %731 = vmatmul.mubr.f32.gmra.mxu0 %v599
        %v732 = vpop.f32.mrf.mxu0
        %v733 = vadd.f32 %v443, %v732
        %v734 = vpop.f32.mrf.mxu0
        %735 = vmatprep.mubr.f32.mxu0 0.0
        %736 = vmatmul.mubr.f32.gmra.mxu0 %v602
        %v737 = vpop.f32.mrf.mxu0
        %v738 = vadd.f32 %v444, %v737
        %v739 = vpop.f32.mrf.mxu0
        %740 = vmatprep.mubr.f32.mxu0 0.0
        %741 = vmatmul.mubr.f32.gmra.mxu0 %v605
        %v742 = vpop.f32.mrf.mxu0
        %v743 = vadd.f32 %v445, %v742
        %v744 = vpop.f32.mrf.mxu0
        %745 = vmatprep.mubr.f32.mxu0 0.0
        %746 = vmatmul.mubr.f32.gmra.mxu0 %v608
        %v747 = vpop.f32.mrf.mxu0
        %v748 = vadd.f32 %v446, %v747
        %v749 = vpop.f32.mrf.mxu0
        %750 = vmatprep.mubr.f32.mxu0 0.0
        %751 = vmatmul.mubr.f32.gmra.mxu0 %v611
        %v752 = vpop.f32.mrf.mxu0
        %v753 = vadd.f32 %v447, %v752
        %v754 = vpop.f32.mrf.mxu0
        %755 = vmatprep.mubr.f32.mxu0 0.0
        %756 = vmatmul.mubr.f32.gmra.mxu0 %v614
        %v757 = vpop.f32.mrf.mxu0
        %v758 = vadd.f32 %v448, %v757
        %v759 = vpop.f32.mrf.mxu0
        %760 = vdwg.mxu0
        %v761 = vmax.f32 %v683, %v723
        %v762 = vmax.f32 %v688, %v728
        %v763 = vmax.f32 %v693, %v733
        %v764 = vmax.f32 %v698, %v738
        %v765 = vmax.f32 %v703, %v743
        %v766 = vmax.f32 %v708, %v748
        %v767 = vmax.f32 %v713, %v753
        %v768 = vmax.f32 %v718, %v758
        %v769 = vsub.f32 %v683, %v761
        %v770 = vsub.f32 %v688, %v762
        %v771 = vsub.f32 %v693, %v763
        %v772 = vsub.f32 %v698, %v764
        %v773 = vsub.f32 %v703, %v765
        %v774 = vsub.f32 %v708, %v766
        %v775 = vsub.f32 %v713, %v767
        %v776 = vsub.f32 %v718, %v768
        %v777 = vmul.f32 %v769, 1.442695
        %v778 = vpow.pop %v777
        %v779 = vmul.f32 %v770, 1.442695
        %v780 = vpow.pop %v779
        %v781 = vmul.f32 %v771, 1.442695
        %v782 = vpow.pop %v781
        %v783 = vmul.f32 %v772, 1.442695
        %v784 = vpow.pop %v783
        %v785 = vmul.f32 %v773, 1.442695
        %v786 = vpow.pop %v785
        %v787 = vmul.f32 %v774, 1.442695
        %v788 = vpow.pop %v787
        %v789 = vmul.f32 %v775, 1.442695
        %v790 = vpow.pop %v789
        %v791 = vmul.f32 %v776, 1.442695
        %v792 = vpow.pop %v791
        %v793 = vsub.f32 %v723, %v761
        %v794 = vsub.f32 %v728, %v762
        %v795 = vsub.f32 %v733, %v763
        %v796 = vsub.f32 %v738, %v764
        %v797 = vsub.f32 %v743, %v765
        %v798 = vsub.f32 %v748, %v766
        %v799 = vsub.f32 %v753, %v767
        %v800 = vsub.f32 %v758, %v768
        %v801 = vmul.f32 %v793, 1.442695
        %v802 = vpow.pop %v801
        %v803 = vmul.f32 %v794, 1.442695
        %v804 = vpow.pop %v803
        %v805 = vmul.f32 %v795, 1.442695
        %v806 = vpow.pop %v805
        %v807 = vmul.f32 %v796, 1.442695
        %v808 = vpow.pop %v807
        %v809 = vmul.f32 %v797, 1.442695
        %v810 = vpow.pop %v809
        %v811 = vmul.f32 %v798, 1.442695
        %v812 = vpow.pop %v811
        %v813 = vmul.f32 %v799, 1.442695
        %v814 = vpow.pop %v813
        %v815 = vmul.f32 %v800, 1.442695
        %v816 = vpow.pop %v815
        %v817 = vadd.f32 %v778, %v802
        %v818 = vadd.f32 %v780, %v804
        %v819 = vadd.f32 %v782, %v806
        %v820 = vadd.f32 %v784, %v808
        %v821 = vadd.f32 %v786, %v810
        %v822 = vadd.f32 %v788, %v812
        %v823 = vadd.f32 %v790, %v814
        %v824 = vadd.f32 %v792, %v816
        %v825 = vrcp.pop %v817
        %v826 = vmul.f32 1.0, %v825
        %v827 = vrcp.pop %v818
        %v828 = vmul.f32 1.0, %v827
        %v829 = vrcp.pop %v819
        %v830 = vmul.f32 1.0, %v829
        %v831 = vrcp.pop %v820
        %v832 = vmul.f32 1.0, %v831
        %v833 = vrcp.pop %v821
        %v834 = vmul.f32 1.0, %v833
        %v835 = vrcp.pop %v822
        %v836 = vmul.f32 1.0, %v835
        %v837 = vrcp.pop %v823
        %v838 = vmul.f32 1.0, %v837
        %v839 = vrcp.pop %v824
        %v840 = vmul.f32 1.0, %v839
        %v841 = vmul.f32 %v778, %v826
        %v842 = vmul.f32 %v780, %v828
        %v843 = vmul.f32 %v782, %v830
        %v844 = vmul.f32 %v784, %v832
        %v845 = vmul.f32 %v786, %v834
        %v846 = vmul.f32 %v788, %v836
        %v847 = vmul.f32 %v790, %v838
        %v848 = vmul.f32 %v792, %v840
        %v849 = vmul.f32 %v802, %v826
        %v850 = vmul.f32 %v804, %v828
        %v851 = vmul.f32 %v806, %v830
        %v852 = vmul.f32 %v808, %v832
        %v853 = vmul.f32 %v810, %v834
        %v854 = vmul.f32 %v812, %v836
        %v855 = vmul.f32 %v814, %v838
        %v856 = vmul.f32 %v816, %v840
        %858 = vset.pattern.permute.xlu0 0
        %859 = vperm.xlu0 %858, %v841
        %v860 = vpop.permute.xlu0 %859
        %863 = vset.pattern.permute.xlu0 0
        %864 = vperm.xlu0 %863, %v842
        %v865 = vpop.permute.xlu0 %864
        %868 = vset.pattern.permute.xlu0 0
        %869 = vperm.xlu0 %868, %v843
        %v870 = vpop.permute.xlu0 %869
        %873 = vset.pattern.permute.xlu0 0
        %874 = vperm.xlu0 %873, %v844
        %v875 = vpop.permute.xlu0 %874
        %878 = vset.pattern.permute.xlu0 0
        %879 = vperm.xlu0 %878, %v845
        %v880 = vpop.permute.xlu0 %879
        %883 = vset.pattern.permute.xlu0 0
        %884 = vperm.xlu0 %883, %v846
        %v885 = vpop.permute.xlu0 %884
        %888 = vset.pattern.permute.xlu0 0
        %889 = vperm.xlu0 %888, %v847
        %v890 = vpop.permute.xlu0 %889
        %893 = vset.pattern.permute.xlu0 0
        %894 = vperm.xlu0 %893, %v848
        %v895 = vpop.permute.xlu0 %894
        %v897 = vmul.f32 %v317, %v860
        %v898 = vmul.f32 %v318, %v860
        %v899 = vmul.f32 %v319, %v865
        %v900 = vmul.f32 %v320, %v865
        %v901 = vmul.f32 %v321, %v870
        %v902 = vmul.f32 %v322, %v870
        %v903 = vmul.f32 %v323, %v875
        %v904 = vmul.f32 %v324, %v875
        %v905 = vmul.f32 %v325, %v880
        %v906 = vmul.f32 %v326, %v880
        %v907 = vmul.f32 %v327, %v885
        %v908 = vmul.f32 %v328, %v885
        %v909 = vmul.f32 %v329, %v890
        %v910 = vmul.f32 %v330, %v890
        %v911 = vmul.f32 %v331, %v895
        %v912 = vmul.f32 %v332, %v895
        %914 = vset.pattern.permute.xlu0 0
        %915 = vperm.xlu0 %914, %v849
        %v916 = vpop.permute.xlu0 %915
        %919 = vset.pattern.permute.xlu0 0
        %920 = vperm.xlu0 %919, %v850
        %v921 = vpop.permute.xlu0 %920
        %924 = vset.pattern.permute.xlu0 0
        %925 = vperm.xlu0 %924, %v851
        %v926 = vpop.permute.xlu0 %925
        %929 = vset.pattern.permute.xlu0 0
        %930 = vperm.xlu0 %929, %v852
        %v931 = vpop.permute.xlu0 %930
        %934 = vset.pattern.permute.xlu0 0
        %935 = vperm.xlu0 %934, %v853
        %v936 = vpop.permute.xlu0 %935
        %939 = vset.pattern.permute.xlu0 0
        %940 = vperm.xlu0 %939, %v854
        %v941 = vpop.permute.xlu0 %940
        %944 = vset.pattern.permute.xlu0 0
        %945 = vperm.xlu0 %944, %v855
        %v946 = vpop.permute.xlu0 %945
        %949 = vset.pattern.permute.xlu0 0
        %950 = vperm.xlu0 %949, %v856
        %v951 = vpop.permute.xlu0 %950
        %v953 = vmul.f32 %v357, %v916
        %v954 = vmul.f32 %v358, %v916
        %v955 = vmul.f32 %v359, %v921
        %v956 = vmul.f32 %v360, %v921
        %v957 = vmul.f32 %v361, %v926
        %v958 = vmul.f32 %v362, %v926
        %v959 = vmul.f32 %v363, %v931
        %v960 = vmul.f32 %v364, %v931
        %v961 = vmul.f32 %v365, %v936
        %v962 = vmul.f32 %v366, %v936
        %v963 = vmul.f32 %v367, %v941
        %v964 = vmul.f32 %v368, %v941
        %v965 = vmul.f32 %v369, %v946
        %v966 = vmul.f32 %v370, %v946
        %v967 = vmul.f32 %v371, %v951
        %v968 = vmul.f32 %v372, %v951
        %v969 = vadd.f32 %v897, %v953
        %v970 = vadd.f32 %v898, %v954
        %v971 = vadd.f32 %v899, %v955
        %v972 = vadd.f32 %v900, %v956
        %v973 = vadd.f32 %v901, %v957
        %v974 = vadd.f32 %v902, %v958
        %v975 = vadd.f32 %v903, %v959
        %v976 = vadd.f32 %v904, %v960
        %v977 = vadd.f32 %v905, %v961
        %v978 = vadd.f32 %v906, %v962
        %v979 = vadd.f32 %v907, %v963
        %v980 = vadd.f32 %v908, %v964
        %v981 = vadd.f32 %v909, %v965
        %v982 = vadd.f32 %v910, %v966
        %v983 = vadd.f32 %v911, %v967
        %v984 = vadd.f32 %v912, %v968
        %985 = vst [vmem:[%s311] sm:$0xff] %v969
        %986 = vst [vmem:[%s311 + $0x8] sm:$0xff] %v970
        %987 = vst [vmem:[%s311 + $0x10] sm:$0xff] %v971
        %988 = vst [vmem:[%s311 + $0x18] sm:$0xff] %v972
        %989 = vst [vmem:[%s311 + $0x20] sm:$0xff] %v973
        %990 = vst [vmem:[%s311 + $0x28] sm:$0xff] %v974
        %991 = vst [vmem:[%s311 + $0x30] sm:$0xff] %v975
        %992 = vst [vmem:[%s311 + $0x38] sm:$0xff] %v976
        %993 = vst [vmem:[%s311 + $0x40] sm:$0xff] %v977
        %994 = vst [vmem:[%s311 + $0x48] sm:$0xff] %v978
        %995 = vst [vmem:[%s311 + $0x50] sm:$0xff] %v979
        %996 = vst [vmem:[%s311 + $0x58] sm:$0xff] %v980
        %997 = vst [vmem:[%s311 + $0x60] sm:$0xff] %v981
        %998 = vst [vmem:[%s311 + $0x68] sm:$0xff] %v982
        %999 = vst [vmem:[%s311 + $0x70] sm:$0xff] %v983
        %1000 = vst [vmem:[%s311 + $0x78] sm:$0xff] %v984
        %s1001 = sand.u32 %s189, 1
        %s1002 = scalar_lea.sflag [#allocation4], %s1001
        %s1003 = sand.u32 %s189, 1
        %s1004 = smul.addr %s1003, 128
        %s1005 = scalar_lea.vmem [#allocation5], %s1004
        // Predicated region
        $region53: #{tpu_custom_call.1} parent=47 // pred_check
          %p1006 = pneg %p199
        $region54: #{tpu_custom_call.1} parent=47 // pred_check_branch
          %1008 = sbr.rel (%p1006) target = $region56
        $region55: #{tpu_custom_call.1} parent=47 // pred_region
          %s1010 = ssub.s32 2048, 2048
          %1011 = vsyncadd %s1002, %s1010
          %s1012 = smul.addr %s24, 16
          %s1013 = smul.addr %s1012, 128
          %s1014 = scalar_lea.hbm %s7, %s1013
          %s1015 = sshll.u32 %s1005, 4
          %s1016 = int_to_ptr.vmem [resolvable:$true] %s1015
          %1021 = dma.vmem_to_hbm [thread:$0]  %s1016, 2048, %s1014, %s1002, 256, 256, 16
        $region56: #{tpu_custom_call.1} parent=47 // pred_fallthru
          _
      $region48: #{tpu_custom_call.1} parent=5 // pred_fallthru
        _
      %p1022 = scmp.le.s32.totalorder 2, %s19
      // Predicated region
      $region57: #{tpu_custom_call.1} parent=5 // pred_check
        %p1023 = pneg %p1022
      $region58: #{tpu_custom_call.1} parent=5 // pred_check_branch
        %1025 = sbr.rel (%p1023) target = $region60
      $region59: #{tpu_custom_call.1} parent=5 // pred_region
        %s1026 = ssub.s32 %s19, 2
        // Predicated region
        $region61: #{tpu_custom_call.1} parent=59 // pred_check
          %p1027 = pneg %p205
        $region62: #{tpu_custom_call.1} parent=59 // pred_check_branch
          %1029 = sbr.rel (%p1027) target = $region64
        $region63: #{tpu_custom_call.1} parent=59 // pred_region
          %s1030 = sand.u32 %s190, 1
          %s1031 = scalar_lea.sflag [#allocation4], %s1030
          %s1032 = sand.u32 %s190, 1
          %s1033 = smul.addr %s1032, 128
          %s1034 = scalar_lea.vmem [#allocation5], %s1033
          %1035 = dma.done %s1031, 2048
        $region64: #{tpu_custom_call.1} parent=59 // pred_fallthru
          _
      $region60: #{tpu_custom_call.1} parent=5 // pred_fallthru
        _
    $region6: #{tpu_custom_call.1} parent=1 // loop_footer
      %s23 = sadd.s32 1, %s19
    $region7: #{tpu_custom_call.1} parent=1 // loop_footer_branch
      %18 = sbr.rel target = $region3
    $region8: #{tpu_custom_call.1} parent=1 // loop_exit
      _
    %1036 = vsyncpa [#allocation3], 1
    %s1037 = scalar_lea.sflag [#allocation3], 1
    %1038 = vsyncpa %s1037, 1
    %1039 = vsyncpa [#allocation4], 1
    %s1040 = scalar_lea.sflag [#allocation4], 1
    %1041 = vsyncpa %s1040, 1

</llo_original>
